<compile_context>
chip_gen: v5e
topology: v5e:2x2
jax: 0.10.0
libtpu: 0.0.40
codegen_flags: <defaults>
</compile_context>

<pallas_src>
import functools

import jax
import jax.numpy as jnp
from jax.experimental import pallas as pl
from jax.experimental.pallas import tpu as pltpu

LANE = 128          # TPU lane width (hidden / action feature axis padded to this)
N_LAYERS = 4        # Linear->ReLU x3 -> Linear (matches the DQN module)
BIAS_ROWS = 16      # bias rows at the tail of the slab (4 real + pad to bf16 tile)


def _round_up(x, m):
    return ((x + m - 1) // m) * m


# --------------------------------------------------------------------------
# Kernel: fused 4-layer MLP on one (TM, obs_pad) batch tile.  Weights+biases
# live in a single resident bf16 VMEM slab shared by every grid step.
# --------------------------------------------------------------------------
def dqn_mlp_kernel(x_ref, wb_ref, out_ref, *, obs_pad):
    f32, bf16 = jnp.float32, jnp.bfloat16

    w2_off = obs_pad
    w3_off = obs_pad + LANE
    w4_off = obs_pad + 2 * LANE
    b_off = obs_pad + 3 * LANE

    # All four biases in one tile-aligned load; kept / added in f32.
    b = wb_ref[pl.ds(b_off, BIAS_ROWS), :].astype(f32)          # (16, LANE)

    x = x_ref[...].astype(bf16)                                 # (TM, obs_pad)

    # Weight blocks read (bf16) at their point of use; f32 accumulation on the
    # MXU, bias-add / ReLU stay f32 (v5e VPU has no bf16 path).
    h = jnp.dot(x, wb_ref[pl.ds(0, obs_pad), :],
                preferred_element_type=f32) + b[0:1, :]
    h = jnp.maximum(h, 0.0)
    h = jnp.dot(h.astype(bf16), wb_ref[pl.ds(w2_off, LANE), :],
                preferred_element_type=f32) + b[1:2, :]
    h = jnp.maximum(h, 0.0)
    h = jnp.dot(h.astype(bf16), wb_ref[pl.ds(w3_off, LANE), :],
                preferred_element_type=f32) + b[2:3, :]
    h = jnp.maximum(h, 0.0)
    h = jnp.dot(h.astype(bf16), wb_ref[pl.ds(w4_off, LANE), :],
                preferred_element_type=f32) + b[3:4, :]

    out_ref[...] = h.astype(out_ref.dtype)


# --------------------------------------------------------------------------
# One-time parameter packing (outside the hot path):
#   PyTorch (out,in)/(out,) -> transposed (in,out), zero-padded, bf16,
#   weights + biases packed into ONE slab at bf16-tile-aligned row offsets:
#     rows [0, obs_pad)                    : W1^T   (obs padded)
#     rows [obs_pad, obs_pad+128)          : W2^T
#     rows [+128, +256)                    : W3^T
#     rows [+256, +384)                    : W4^T
#     rows [+384, +384+16)                 : b1..b4 (one row each) + pad
# --------------------------------------------------------------------------
def pack_dqn_params(params):
    assert len(params) == N_LAYERS
    ws = [jnp.asarray(w, jnp.float32) for (w, _) in params]
    bs = [jnp.asarray(b, jnp.float32) for (_, b) in params]

    n_obs = ws[0].shape[1]
    for w in ws:
        assert w.shape[0] <= LANE, "layer output dim must be <= 128"
    for w in ws[1:]:
        assert w.shape[1] <= LANE, "hidden dim must be <= 128"

    obs_pad = _round_up(max(n_obs, 16), 16)         # bf16 sublane-tile aligned
    rows = obs_pad + 3 * LANE + BIAS_ROWS
    slab = jnp.zeros((rows, LANE), jnp.float32)

    offs = (0, obs_pad, obs_pad + LANE, obs_pad + 2 * LANE)
    for w, off in zip(ws, offs):
        wt = w.T                                    # (in, out)
        slab = slab.at[off:off + wt.shape[0], :wt.shape[1]].set(wt)

    b_off = obs_pad + 3 * LANE
    for i, b in enumerate(bs):
        slab = slab.at[b_off + i, :b.shape[0]].set(b)

    return slab.astype(jnp.bfloat16)


# --------------------------------------------------------------------------
# Forward wrapper: pads batch to a multiple of 8 and obs to obs_pad, launches
# a 1-D "parallel" grid over the batch axis (>= 2 steps for big batches so
# v7x megacore shards), and slices the real (batch, n_actions) result out.
# --------------------------------------------------------------------------
@functools.partial(jax.jit, static_argnames=("n_actions", "tile_m"))
def dqn_forward(x, wb_slab, n_actions, *, tile_m=512):
    x = jnp.asarray(x, jnp.float32)
    batch, n_obs = x.shape

    obs_pad = wb_slab.shape[0] - 3 * LANE - BIAS_ROWS
    assert n_obs <= obs_pad, "observation dim larger than packed slab"

    batch_pad = _round_up(batch, 8)
    xp = jnp.zeros((batch_pad, obs_pad), jnp.float32)
    xp = xp.at[:batch, :n_obs].set(x)

    # Big tiles amortize per-grid-step overhead; cap so large batches still
    # produce >= 2 grid steps (megacore sharding on v7x).
    tm = min(tile_m, _round_up(pl.cdiv(batch_pad, 2), 8))
    tm = max(tm, 8)
    grid = pl.cdiv(batch_pad, tm)

    out = pl.pallas_call(
        functools.partial(dqn_mlp_kernel, obs_pad=obs_pad),
        out_shape=jax.ShapeDtypeStruct((batch_pad, LANE), jnp.float32),
        grid=(grid,),
        in_specs=[
            pl.BlockSpec((tm, obs_pad), lambda i: (i, 0)),   # x tile per step
            pl.BlockSpec(wb_slab.shape, lambda i: (0, 0)),   # resident W+b slab
        ],
        out_specs=pl.BlockSpec((tm, LANE), lambda i: (i, 0)),
        compiler_params=pltpu.CompilerParams(
            dimension_semantics=("parallel",)),
    )(xp, wb_slab)

    # TODO(synk): callers that only need greedy actions could consume an
    # in-kernel fused argmax over the action lanes to cut output writeback.
    return out[:batch, :n_actions]


# --------------------------------------------------------------------------
# Init + pure-JAX f32 reference (PyTorch nn.Linear semantics).
# --------------------------------------------------------------------------
def init_dqn_params(key, n_observations, n_actions, n_units=16):
    dims = [(n_observations, n_units),
            (n_units, n_units),
            (n_units, n_units),
            (n_units, n_actions)]
    params = []
    for (fan_in, fan_out) in dims:
        key, kw, kb = jax.random.split(key, 3)
        bound = 1.0 / jnp.sqrt(jnp.float32(fan_in))
        w = jax.random.uniform(kw, (fan_out, fan_in), jnp.float32, -bound, bound)
        b = jax.random.uniform(kb, (fan_out,), jnp.float32, -bound, bound)
        params.append((w, b))
    return params


def dqn_forward_ref(x, params):
    h = jnp.asarray(x, jnp.float32)
    for i, (w, b) in enumerate(params):
        h = h @ w.T + b
        if i < len(params) - 1:
            h = jnp.maximum(h, 0.0)
    return h


if __name__ == "__main__":
    key = jax.random.PRNGKey(0)
    k_params, k_x1, k_x2 = jax.random.split(key, 3)

    n_observations = 4   # TriangleTask observation dim
    n_actions = 3        # TriangleTask action count
    n_units = 16

    params = init_dqn_params(k_params, n_observations, n_actions, n_units)
    wb_slab = pack_dqn_params(params)   # one-time packing, outside the hot path

    # bf16 weights/activations with f32 accumulation -> loosened tolerance
    # vs. the pure-f32 reference (per review).
    ATOL = RTOL = 5e-2

    # Small batch: single grid step, partial sublane tile.
    x_small = jax.random.normal(k_x1, (4, n_observations), jnp.float32)
    out_small = jax.block_until_ready(
        dqn_forward(x_small, wb_slab, n_actions))
    ref_small = dqn_forward_ref(x_small, params)
    assert out_small.shape == (4, n_actions)
    assert jnp.allclose(out_small, ref_small, atol=ATOL, rtol=RTOL), \
        "mismatch vs reference (small batch)"

    # Larger batch: grid > 1 (parallel/megacore axis) + partial last tile,
    # batch padded only to a multiple of 8 (no junk full-tile rows).
    x_big = jax.random.normal(k_x2, (200, n_observations), jnp.float32)
    out_big = jax.block_until_ready(
        dqn_forward(x_big, wb_slab, n_actions))
    ref_big = dqn_forward_ref(x_big, params)
    assert out_big.shape == (200, n_actions)
    assert jnp.allclose(out_big, ref_big, atol=ATOL, rtol=RTOL), \
        "mismatch vs reference (batched grid)"

    print("KERNEL_OK")
</pallas_src>

<mosaic_0001>
module attributes {stable_mosaic.version = 11 : i64} {
  func.func @dqn_mlp_kernel(%arg0: i32, %arg1: memref<8x16xf32, #tpu.memory_space<vmem>>, %arg2: memref<416x128xbf16, #tpu.memory_space<vmem>>, %arg3: memref<8x128xf32, #tpu.memory_space<vmem>>) attributes {dimension_semantics = [#tpu.dimension_semantics<parallel>], iteration_bounds = array<i64: 1>, scalar_prefetch = 0 : i64, scratch_operands = 0 : i64, tpu.core_type = #tpu.core_type<tc>, window_params = [{transform_indices = @transform_0, window_bounds = array<i64: 8, 16>}, {pipeline_mode = #tpu.pipeline_mode<synchronous>, transform_indices = @transform_1, window_bounds = array<i64: 416, 128>}, {transform_indices = @transform_2, window_bounds = array<i64: 8, 128>}]} {
    %c400 = arith.constant 400 : index
    %c0 = arith.constant 0 : index
    %0 = vector.load %arg2[%c400, %c0] : memref<416x128xbf16, #tpu.memory_space<vmem>>, vector<16x128xbf16>
    %1 = arith.extf %0 : vector<16x128xbf16> to vector<16x128xf32>
    %c0_0 = arith.constant 0 : index
    %c0_1 = arith.constant 0 : index
    %2 = vector.load %arg1[%c0_0, %c0_1] : memref<8x16xf32, #tpu.memory_space<vmem>>, vector<8x16xf32>
    %3 = arith.truncf %2 : vector<8x16xf32> to vector<8x16xbf16>
    %c0_2 = arith.constant 0 : index
    %c0_3 = arith.constant 0 : index
    %4 = vector.load %arg2[%c0_2, %c0_3] : memref<416x128xbf16, #tpu.memory_space<vmem>>, vector<16x128xbf16>
    %cst = arith.constant dense<0.000000e+00> : vector<8x128xf32>
    %5 = tpu.matmul %3, %4, %cst {dimension_numbers = #tpu.dot_dimension_numbers<[1], [0], [0], [1], [0, 0, 1, 1], [], []>} : vector<8x16xbf16>, vector<16x128xbf16>, vector<8x128xf32> -> vector<8x128xf32>
    %6 = vector.extract_strided_slice %1 {offsets = [0, 0], sizes = [1, 128], strides = [1, 1]} : vector<16x128xf32> to vector<1x128xf32>
    %7 = vector.broadcast %6 : vector<1x128xf32> to vector<8x128xf32>
    %8 = arith.addf %5, %7 : vector<8x128xf32>
    %cst_4 = arith.constant 0.000000e+00 : f32
    %9 = vector.broadcast %cst_4 : f32 to vector<8x128xf32>
    %10 = arith.maximumf %8, %9 : vector<8x128xf32>
    %11 = arith.truncf %10 : vector<8x128xf32> to vector<8x128xbf16>
    %c16 = arith.constant 16 : index
    %c0_5 = arith.constant 0 : index
    %12 = vector.load %arg2[%c16, %c0_5] : memref<416x128xbf16, #tpu.memory_space<vmem>>, vector<128x128xbf16>
    %cst_6 = arith.constant dense<0.000000e+00> : vector<8x128xf32>
    %13 = tpu.matmul %11, %12, %cst_6 {dimension_numbers = #tpu.dot_dimension_numbers<[1], [0], [0], [1], [0, 0, 1, 1], [], []>} : vector<8x128xbf16>, vector<128x128xbf16>, vector<8x128xf32> -> vector<8x128xf32>
    %14 = vector.extract_strided_slice %1 {offsets = [1, 0], sizes = [1, 128], strides = [1, 1]} : vector<16x128xf32> to vector<1x128xf32>
    %15 = vector.broadcast %14 : vector<1x128xf32> to vector<8x128xf32>
    %16 = arith.addf %13, %15 : vector<8x128xf32>
    %cst_7 = arith.constant 0.000000e+00 : f32
    %17 = vector.broadcast %cst_7 : f32 to vector<8x128xf32>
    %18 = arith.maximumf %16, %17 : vector<8x128xf32>
    %19 = arith.truncf %18 : vector<8x128xf32> to vector<8x128xbf16>
    %c144 = arith.constant 144 : index
    %c0_8 = arith.constant 0 : index
    %20 = vector.load %arg2[%c144, %c0_8] : memref<416x128xbf16, #tpu.memory_space<vmem>>, vector<128x128xbf16>
    %cst_9 = arith.constant dense<0.000000e+00> : vector<8x128xf32>
    %21 = tpu.matmul %19, %20, %cst_9 {dimension_numbers = #tpu.dot_dimension_numbers<[1], [0], [0], [1], [0, 0, 1, 1], [], []>} : vector<8x128xbf16>, vector<128x128xbf16>, vector<8x128xf32> -> vector<8x128xf32>
    %22 = vector.extract_strided_slice %1 {offsets = [2, 0], sizes = [1, 128], strides = [1, 1]} : vector<16x128xf32> to vector<1x128xf32>
    %23 = vector.broadcast %22 : vector<1x128xf32> to vector<8x128xf32>
    %24 = arith.addf %21, %23 : vector<8x128xf32>
    %cst_10 = arith.constant 0.000000e+00 : f32
    %25 = vector.broadcast %cst_10 : f32 to vector<8x128xf32>
    %26 = arith.maximumf %24, %25 : vector<8x128xf32>
    %27 = arith.truncf %26 : vector<8x128xf32> to vector<8x128xbf16>
    %c272 = arith.constant 272 : index
    %c0_11 = arith.constant 0 : index
    %28 = vector.load %arg2[%c272, %c0_11] : memref<416x128xbf16, #tpu.memory_space<vmem>>, vector<128x128xbf16>
    %cst_12 = arith.constant dense<0.000000e+00> : vector<8x128xf32>
    %29 = tpu.matmul %27, %28, %cst_12 {dimension_numbers = #tpu.dot_dimension_numbers<[1], [0], [0], [1], [0, 0, 1, 1], [], []>} : vector<8x128xbf16>, vector<128x128xbf16>, vector<8x128xf32> -> vector<8x128xf32>
    %30 = vector.extract_strided_slice %1 {offsets = [3, 0], sizes = [1, 128], strides = [1, 1]} : vector<16x128xf32> to vector<1x128xf32>
    %31 = vector.broadcast %30 : vector<1x128xf32> to vector<8x128xf32>
    %32 = arith.addf %29, %31 : vector<8x128xf32>
    %c0_13 = arith.constant 0 : index
    %c0_14 = arith.constant 0 : index
    %33 = vector.load %arg3[%c0_13, %c0_14] : memref<8x128xf32, #tpu.memory_space<vmem>>, vector<8x128xf32>
    tpu.vector_store %arg3[%c0_13, %c0_14], %32 {strides = array<i32>} : memref<8x128xf32, #tpu.memory_space<vmem>>, vector<8x128xf32>,
    return
  }
  func.func @transform_0(%arg0: i32) -> (i32, i32) {
    %c0_i32 = arith.constant 0 : i32
    %c0_i32_0 = arith.constant 0 : i32
    return %arg0, %c0_i32 : i32, i32
  }
  func.func @transform_1(%arg0: i32) -> (i32, i32) {
    %c0_i32 = arith.constant 0 : i32
    %c0_i32_0 = arith.constant 0 : i32
    %c0_i32_1 = arith.constant 0 : i32
    return %c0_i32, %c0_i32_0 : i32, i32
  }
  func.func @transform_2(%arg0: i32) -> (i32, i32) {
    %c0_i32 = arith.constant 0 : i32
    %c0_i32_0 = arith.constant 0 : i32
    return %arg0, %c0_i32 : i32, i32
  }
}

</mosaic_0001>

<llo_original>
// kernel: dqn_forward.1
$region0: #{dqn_forward.1}
  #allocation0 [shape = 'u32[]', space=smem, size = 0x4, offset = 0x4, fixed_abs, tag = 'smem constant byte address 0x4 - core index']
  #allocation1 [shape = 'u32[72,128]{1,0:T(1,128)}', space=vmem, size = 0x9000, scoped, tag = 'internal scratch']
  %s0 = inlined_call_operand.vmem [shape: f32[8,16], index: 0, kind: input, shape index: {}]
  %s1 = inlined_call_operand.hbm [shape: bf16[416,128], index: 1, kind: input, shape index: {}]
  %s2 = inlined_call_operand.vmem [shape: f32[8,128], index: 2, kind: output, shape index: {}]
  %s3 = sld [smem:[#allocation0]]
  $region22: #{dqn_forward.1} parent=0
    _
  %s5 = ssub.s32 1, %s3
  %s6 = scalar_select 0, %s5, %s3
  $region1: #{dqn_forward.1} parent=0
    #allocation2 [shape = 'u8[106496]{0}', space=vmem, size = 0x1a000, scoped, tag = 'input window, operand 1, single buffered']
    #allocation3 [shape = 's32[1]{0}', space=sflag, size = 0x4, scoped, tag = 'scoped memory for dqn_forward.1']
    %7 = vsyncpa [#allocation3], 0
    // Predicated region
    $region2: #{dqn_forward.1} parent=1 // pred_check
      _
    $region3: #{dqn_forward.1} parent=1 // pred_check_branch
      %9 = sbr.rel (0) target = $region5
    $region4: #{dqn_forward.1} parent=1 // pred_region
      _
    $region5: #{dqn_forward.1} parent=1 // pred_fallthru
      _
    // Predicated region
    $region6: #{dqn_forward.1} parent=1 // pred_check
      _
    $region7: #{dqn_forward.1} parent=1 // pred_check_branch
      %11 = sbr.rel (0) target = $region9
    $region8: #{dqn_forward.1} parent=1 // pred_region
      %13 = vsyncadd [#allocation3], 0
      %s14 = sshll.u32 %s1, 4
      %s15 = int_to_ptr.hbm [resolvable:$true] %s14
      %s16 = sshll.u32 [#allocation2], 4
      %s17 = int_to_ptr.vmem [resolvable:$true] %s16
      %22 = dma.hbm_to_vmem [thread:$0]  %s15, 3328, %s17, [#allocation3], 64, 64, 4
    $region9: #{dqn_forward.1} parent=1 // pred_fallthru
      _
    // Predicated region
    $region10: #{dqn_forward.1} parent=1 // pred_check
      _
    $region11: #{dqn_forward.1} parent=1 // pred_check_branch
      %24 = sbr.rel (0) target = $region13
    $region12: #{dqn_forward.1} parent=1 // pred_region
      %26 = dma.done [#allocation3], 3328
    $region13: #{dqn_forward.1} parent=1 // pred_fallthru
      _
    %v28 = vld [vmem:[#allocation2 + $0xc8] sm:$0xf]
    %v29 = vunpack.c.l.bf16 %v28
    %v30 = vld [vmem:[%s0] sm:$0xff]
    %v31 = vpack.c.bf16 %v30, %v30
    %v32 = vld [vmem:[#allocation2] sm:$0xf]
    %v33 = vld [vmem:[#allocation2 + $0x4] sm:$0xf]
    %v34 = vperm.slane %v29, 0
    %v37 = vunpack.c.l.b16 %v32
    %v38 = vunpack.c.l.b16 %v33
    %v39 = vpack.c.b16 %v38, %v37
    %vm41 = vcmask 130048
    %v43 = vsel %vm41, %v31, 0
    %45 = vmatpush.bf16.msra.mxu0 0
    %46 = vmatpush.bf16.msra.mxu0 0
    %47 = vmatpush.bf16.msra.mxu0 0
    %48 = vmatpush.bf16.msra.mxu0 0
    %49 = vmatpush.bf16.msra.mxu0 0
    %50 = vmatpush.bf16.msra.mxu0 0
    %51 = vmatpush.bf16.msra.mxu0 0
    %52 = vmatpush.bf16.msra.mxu0 %v39
    %53 = vmatmul.bf16.gmra.mxu0 %v43
    %v54 = vpop.f32.mrf.mxu0
    %v55 = vadd.f32 %v34, %v54
    %v56 = vpop.f32.mrf.mxu0
    %57 = vdwg.mxu0
    %v58 = vmax.f32 %v55, 0.0
    %v59 = vpack.c.bf16 %v58, %v58
    %v60 = vld [vmem:[#allocation2 + $0x8] sm:$0xf]
    %v61 = vld [vmem:[#allocation2 + $0xc] sm:$0xf]
    %v62 = vld [vmem:[#allocation2 + $0x10] sm:$0xf]
    %v63 = vld [vmem:[#allocation2 + $0x14] sm:$0xf]
    %v64 = vld [vmem:[#allocation2 + $0x18] sm:$0xf]
    %v65 = vld [vmem:[#allocation2 + $0x1c] sm:$0xf]
    %v66 = vld [vmem:[#allocation2 + $0x20] sm:$0xf]
    %v67 = vld [vmem:[#allocation2 + $0x24] sm:$0xf]
    %v68 = vld [vmem:[#allocation2 + $0x28] sm:$0xf]
    %v69 = vld [vmem:[#allocation2 + $0x2c] sm:$0xf]
    %v70 = vld [vmem:[#allocation2 + $0x30] sm:$0xf]
    %v71 = vld [vmem:[#allocation2 + $0x34] sm:$0xf]
    %v72 = vld [vmem:[#allocation2 + $0x38] sm:$0xf]
    %v73 = vld [vmem:[#allocation2 + $0x3c] sm:$0xf]
    %v74 = vld [vmem:[#allocation2 + $0x40] sm:$0xf]
    %v75 = vld [vmem:[#allocation2 + $0x44] sm:$0xf]
    %v76 = vperm.slane %v29, 1
    %v93 = vunpack.c.l.b16 %v60
    %v94 = vunpack.c.l.b16 %v61
    %v95 = vunpack.c.l.b16 %v62
    %v96 = vunpack.c.l.b16 %v63
    %v97 = vunpack.c.l.b16 %v64
    %v98 = vunpack.c.l.b16 %v65
    %v99 = vunpack.c.l.b16 %v66
    %v100 = vunpack.c.l.b16 %v67
    %v101 = vunpack.c.l.b16 %v68
    %v102 = vunpack.c.l.b16 %v69
    %v103 = vunpack.c.l.b16 %v70
    %v104 = vunpack.c.l.b16 %v71
    %v105 = vunpack.c.l.b16 %v72
    %v106 = vunpack.c.l.b16 %v73
    %v107 = vunpack.c.l.b16 %v74
    %v108 = vunpack.c.l.b16 %v75
    %v109 = vpack.c.b16 %v94, %v93
    %v110 = vpack.c.b16 %v96, %v95
    %v111 = vpack.c.b16 %v98, %v97
    %v112 = vpack.c.b16 %v100, %v99
    %v113 = vpack.c.b16 %v102, %v101
    %v114 = vpack.c.b16 %v104, %v103
    %v115 = vpack.c.b16 %v106, %v105
    %v116 = vpack.c.b16 %v108, %v107
    %125 = vmatpush.bf16.msra.mxu0 %v116
    %126 = vmatpush.bf16.msra.mxu0 %v115
    %127 = vmatpush.bf16.msra.mxu0 %v114
    %128 = vmatpush.bf16.msra.mxu0 %v113
    %129 = vmatpush.bf16.msra.mxu0 %v112
    %130 = vmatpush.bf16.msra.mxu0 %v111
    %131 = vmatpush.bf16.msra.mxu0 %v110
    %132 = vmatpush.bf16.msra.mxu0 %v109
    %133 = vmatmul.bf16.gmra.mxu0 %v59
    %v134 = vpop.f32.mrf.mxu0
    %v135 = vadd.f32 %v76, %v134
    %v136 = vpop.f32.mrf.mxu0
    %137 = vdwg.mxu0
    %v138 = vmax.f32 %v135, 0.0
    %v139 = vpack.c.bf16 %v138, %v138
    %v140 = vld [vmem:[#allocation2 + $0x48] sm:$0xf]
    %v141 = vld [vmem:[#allocation2 + $0x4c] sm:$0xf]
    %v142 = vld [vmem:[#allocation2 + $0x50] sm:$0xf]
    %v143 = vld [vmem:[#allocation2 + $0x54] sm:$0xf]
    %v144 = vld [vmem:[#allocation2 + $0x58] sm:$0xf]
    %v145 = vld [vmem:[#allocation2 + $0x5c] sm:$0xf]
    %v146 = vld [vmem:[#allocation2 + $0x60] sm:$0xf]
    %v147 = vld [vmem:[#allocation2 + $0x64] sm:$0xf]
    %v148 = vld [vmem:[#allocation2 + $0x68] sm:$0xf]
    %v149 = vld [vmem:[#allocation2 + $0x6c] sm:$0xf]
    %v150 = vld [vmem:[#allocation2 + $0x70] sm:$0xf]
    %v151 = vld [vmem:[#allocation2 + $0x74] sm:$0xf]
    %v152 = vld [vmem:[#allocation2 + $0x78] sm:$0xf]
    %v153 = vld [vmem:[#allocation2 + $0x7c] sm:$0xf]
    %v154 = vld [vmem:[#allocation2 + $0x80] sm:$0xf]
    %v155 = vld [vmem:[#allocation2 + $0x84] sm:$0xf]
    %v156 = vperm.slane %v29, 2
    %v173 = vunpack.c.l.b16 %v140
    %v174 = vunpack.c.l.b16 %v141
    %v175 = vunpack.c.l.b16 %v142
    %v176 = vunpack.c.l.b16 %v143
    %v177 = vunpack.c.l.b16 %v144
    %v178 = vunpack.c.l.b16 %v145
    %v179 = vunpack.c.l.b16 %v146
    %v180 = vunpack.c.l.b16 %v147
    %v181 = vunpack.c.l.b16 %v148
    %v182 = vunpack.c.l.b16 %v149
    %v183 = vunpack.c.l.b16 %v150
    %v184 = vunpack.c.l.b16 %v151
    %v185 = vunpack.c.l.b16 %v152
    %v186 = vunpack.c.l.b16 %v153
    %v187 = vunpack.c.l.b16 %v154
    %v188 = vunpack.c.l.b16 %v155
    %v189 = vpack.c.b16 %v174, %v173
    %v190 = vpack.c.b16 %v176, %v175
    %v191 = vpack.c.b16 %v178, %v177
    %v192 = vpack.c.b16 %v180, %v179
    %v193 = vpack.c.b16 %v182, %v181
    %v194 = vpack.c.b16 %v184, %v183
    %v195 = vpack.c.b16 %v186, %v185
    %v196 = vpack.c.b16 %v188, %v187
    %205 = vmatpush.bf16.msra.mxu0 %v196
    %206 = vmatpush.bf16.msra.mxu0 %v195
    %207 = vmatpush.bf16.msra.mxu0 %v194
    %208 = vmatpush.bf16.msra.mxu0 %v193
    %209 = vmatpush.bf16.msra.mxu0 %v192
    %210 = vmatpush.bf16.msra.mxu0 %v191
    %211 = vmatpush.bf16.msra.mxu0 %v190
    %212 = vmatpush.bf16.msra.mxu0 %v189
    %213 = vmatmul.bf16.gmra.mxu0 %v139
    %v214 = vpop.f32.mrf.mxu0
    %v215 = vadd.f32 %v156, %v214
    %v216 = vpop.f32.mrf.mxu0
    %217 = vdwg.mxu0
    %v218 = vmax.f32 %v215, 0.0
    %v219 = vpack.c.bf16 %v218, %v218
    %v220 = vld [vmem:[#allocation2 + $0x88] sm:$0xf]
    %v221 = vld [vmem:[#allocation2 + $0x8c] sm:$0xf]
    %v222 = vld [vmem:[#allocation2 + $0x90] sm:$0xf]
    %v223 = vld [vmem:[#allocation2 + $0x94] sm:$0xf]
    %v224 = vld [vmem:[#allocation2 + $0x98] sm:$0xf]
    %v225 = vld [vmem:[#allocation2 + $0x9c] sm:$0xf]
    %v226 = vld [vmem:[#allocation2 + $0xa0] sm:$0xf]
    %v227 = vld [vmem:[#allocation2 + $0xa4] sm:$0xf]
    %v228 = vld [vmem:[#allocation2 + $0xa8] sm:$0xf]
    %v229 = vld [vmem:[#allocation2 + $0xac] sm:$0xf]
    %v230 = vld [vmem:[#allocation2 + $0xb0] sm:$0xf]
    %v231 = vld [vmem:[#allocation2 + $0xb4] sm:$0xf]
    %v232 = vld [vmem:[#allocation2 + $0xb8] sm:$0xf]
    %v233 = vld [vmem:[#allocation2 + $0xbc] sm:$0xf]
    %v234 = vld [vmem:[#allocation2 + $0xc0] sm:$0xf]
    %v235 = vld [vmem:[#allocation2 + $0xc4] sm:$0xf]
    %v236 = vperm.slane %v29, 3
    %v253 = vunpack.c.l.b16 %v220
    %v254 = vunpack.c.l.b16 %v221
    %v255 = vunpack.c.l.b16 %v222
    %v256 = vunpack.c.l.b16 %v223
    %v257 = vunpack.c.l.b16 %v224
    %v258 = vunpack.c.l.b16 %v225
    %v259 = vunpack.c.l.b16 %v226
    %v260 = vunpack.c.l.b16 %v227
    %v261 = vunpack.c.l.b16 %v228
    %v262 = vunpack.c.l.b16 %v229
    %v263 = vunpack.c.l.b16 %v230
    %v264 = vunpack.c.l.b16 %v231
    %v265 = vunpack.c.l.b16 %v232
    %v266 = vunpack.c.l.b16 %v233
    %v267 = vunpack.c.l.b16 %v234
    %v268 = vunpack.c.l.b16 %v235
    %v269 = vpack.c.b16 %v254, %v253
    %v270 = vpack.c.b16 %v256, %v255
    %v271 = vpack.c.b16 %v258, %v257
    %v272 = vpack.c.b16 %v260, %v259
    %v273 = vpack.c.b16 %v262, %v261
    %v274 = vpack.c.b16 %v264, %v263
    %v275 = vpack.c.b16 %v266, %v265
    %v276 = vpack.c.b16 %v268, %v267
    %285 = vmatpush.bf16.msra.mxu0 %v276
    %286 = vmatpush.bf16.msra.mxu0 %v275
    %287 = vmatpush.bf16.msra.mxu0 %v274
    %288 = vmatpush.bf16.msra.mxu0 %v273
    %289 = vmatpush.bf16.msra.mxu0 %v272
    %290 = vmatpush.bf16.msra.mxu0 %v271
    %291 = vmatpush.bf16.msra.mxu0 %v270
    %292 = vmatpush.bf16.msra.mxu0 %v269
    %293 = vmatmul.bf16.gmra.mxu0 %v219
    %v294 = vpop.f32.mrf.mxu0
    %v295 = vadd.f32 %v236, %v294
    %v296 = vpop.f32.mrf.mxu0
    %297 = vdwg.mxu0
    %298 = vst [vmem:[%s2] sm:$0xff] %v295
    // Predicated region
    $region14: #{dqn_forward.1} parent=1 // pred_check
      _
    $region15: #{dqn_forward.1} parent=1 // pred_check_branch
      %300 = sbr.rel (0) target = $region17
    $region16: #{dqn_forward.1} parent=1 // pred_region
      _
    $region17: #{dqn_forward.1} parent=1 // pred_fallthru
      _
    // Predicated region
    $region18: #{dqn_forward.1} parent=1 // pred_check
      _
    $region19: #{dqn_forward.1} parent=1 // pred_check_branch
      %302 = sbr.rel (0) target = $region21
    $region20: #{dqn_forward.1} parent=1 // pred_region
      _
    $region21: #{dqn_forward.1} parent=1 // pred_fallthru
      _
    %303 = vsyncpa [#allocation3], 1

</llo_original>
